<compile_context>
chip_gen: v6e
topology: v6e:2x2x1
jax: 0.10.0
libtpu: 0.0.40
codegen_flags: <defaults>
</compile_context>

<pallas_src>
import functools
import math

import jax
import jax.numpy as jnp
from jax.experimental import pallas as pl
from jax.experimental.pallas import tpu as pltpu


def _roll(x, shift, axis, use_hw_roll):
    """torch.roll semantics along one axis: out[j] = x[(j - shift) % n]."""
    n = x.shape[axis]
    s = shift % n
    if s == 0:
        return x
    if use_hw_roll:
        # XLU rotate (vrot) -- single pass, no VMEM temporary.
        return pltpu.roll(x, s, axis)
    # Fallback for unaligned lane/sublane extents or sub-32-bit dtypes.
    hi = jax.lax.slice_in_dim(x, n - s, n, axis=axis)
    lo = jax.lax.slice_in_dim(x, 0, n - s, axis=axis)
    return jax.lax.concatenate([hi, lo], dimension=axis)


def _full_block_kernel(x_ref, o_ref, *, sh, sw, sd_lane, use_hw_roll):
    # Block = [1, H, W, DC]; one batch element per grid step.
    x = x_ref[0]                              # [H, W, DC]
    x = _roll(x, sw, 1, use_hw_roll)          # W roll  (sublane, XLU)
    x = _roll(x, sd_lane, 2, use_hw_roll)     # D roll expressed as lane roll by sd*C
    if sh == 0:
        o_ref[0] = x
    else:
        h = x.shape[0]
        # H is a leading (untiled) dim: these are plain vreg-granular stores,
        # no masking, no re-layout, and no full-block temporary.
        o_ref[0, sh:] = x[: h - sh]
        o_ref[0, :sh] = x[h - sh:]


def _h_tiled_kernel(x_ref, o_ref, *, sw, sd_lane, use_hw_roll):
    # Block = [1, TH, W, DC]; the H roll is done by the input index_map (DMA).
    x = x_ref[0]
    x = _roll(x, sw, 1, use_hw_roll)
    x = _roll(x, sd_lane, 2, use_hw_roll)
    o_ref[0] = x


def _vmem_capacity_bytes():
    try:
        info = pltpu.get_tpu_info()
        cap = int(getattr(info, "vmem_capacity_bytes", 0) or 0)
        if cap > 0:
            return cap
    except Exception:
        pass
    return 64 * 1024 * 1024  # conservative: v7x per-TensorCore VMEM


def _largest_divisor_leq(n, cap):
    cap = max(1, min(n, cap))
    for t in range(cap, 0, -1):
        if n % t == 0:
            return t
    return 1


def cyclic_shift(x, displacement, *, max_full_block_bytes=None, donate_input=False):
    """torch.roll(x, shifts=(d, d, d), dims=(1, 2, 3)) for x = [B, H, W, D, C]."""
    B, H, W, D, C = x.shape
    sh, sw, sd = displacement % H, displacement % W, displacement % D
    if sh == 0 and sw == 0 and sd == 0:
        return x

    DC = D * C
    itemsize = jnp.dtype(x.dtype).itemsize
    x2 = x.reshape(B, H, W, DC)               # free view: trailing dims collapse

    # Generation-aware VMEM budget (v7x: 64 MiB/TC; v5e/v6e: 128 MiB).
    vmem_cap = _vmem_capacity_bytes()
    vmem_limit = min(vmem_cap * 5 // 8, 64 * 1024 * 1024)

    # pltpu.roll path requires native (8, 128)-tiled extents and 32-bit dtype;
    # otherwise fall back to slice+concat (correct, slower).
    use_hw_roll = (itemsize == 4) and (W % 8 == 0) and (DC % 128 == 0)

    cost = pl.CostEstimate(flops=0, transcendentals=0,
                           bytes_accessed=2 * B * H * W * DC * itemsize)
    sd_lane = sd * C

    full_block_bytes = H * W * DC * itemsize
    # Footprint guard: in + out blocks, each double-buffered (~4x), plus
    # headroom for roll temporaries (~2x).
    full_budget = (vmem_limit // 6) if max_full_block_bytes is None \
        else max_full_block_bytes
    want_multi_step = (B < 2) and (H >= 2)    # keep both v7x TensorCores busy

    if full_block_bytes <= full_budget and not want_multi_step:
        kern = functools.partial(_full_block_kernel, sh=sh, sw=sw,
                                 sd_lane=sd_lane, use_hw_roll=use_hw_roll)
        out = pl.pallas_call(
            kern,
            out_shape=jax.ShapeDtypeStruct((B, H, W, DC), x.dtype),
            grid=(B,),
            in_specs=[pl.BlockSpec((1, H, W, DC), lambda b: (b, 0, 0, 0))],
            out_specs=pl.BlockSpec((1, H, W, DC), lambda b: (b, 0, 0, 0)),
            compiler_params=pltpu.CompilerParams(
                dimension_semantics=("parallel",),
                vmem_limit_bytes=vmem_limit),
            cost_estimate=cost,
            # Safe only on this path: every grid step fully reads its own batch
            # block before writing it back. (Never alias the H-tiled path.)
            input_output_aliases=({0: 0} if donate_input else {}),
        )(x2)
    else:
        # H-tiled path: blocks of TH rows with TH | gcd(sh, H), so the H roll is
        # an exact permutation of block indices handled by the input index_map.
        g = H if sh == 0 else math.gcd(sh, H)
        row_bytes = W * DC * itemsize
        rows_budget = max(1, vmem_limit // max(1, 6 * row_bytes))
        cap = rows_budget
        if B < 2 and H >= 2:
            cap = min(cap, H // 2)            # guarantee >= 2 grid steps
        th = _largest_divisor_leq(g, cap)
        nblk = H // th
        kshift = sh // th

        def in_index_map(b, i):
            return (b, (i + nblk - kshift) % nblk, 0, 0)

        def out_index_map(b, i):
            return (b, i, 0, 0)

        kern = functools.partial(_h_tiled_kernel, sw=sw, sd_lane=sd_lane,
                                 use_hw_roll=use_hw_roll)
        out = pl.pallas_call(
            kern,
            out_shape=jax.ShapeDtypeStruct((B, H, W, DC), x.dtype),
            grid=(B, nblk),
            in_specs=[pl.BlockSpec((1, th, W, DC), in_index_map)],
            out_specs=pl.BlockSpec((1, th, W, DC), out_index_map),
            compiler_params=pltpu.CompilerParams(
                dimension_semantics=("parallel", "parallel"),
                vmem_limit_bytes=vmem_limit),
            cost_estimate=cost,
        )(x2)

    return out.reshape(B, H, W, D, C)


if __name__ == "__main__":
    key = jax.random.PRNGKey(0)
    B, H, W, D, C = 2, 8, 8, 8, 32
    x = jax.random.normal(key, (B, H, W, D, C), jnp.float32)

    # 1) Full-block path (pltpu.roll + direct H slab stores), Swin forward shift.
    disp = -2
    fwd = jax.jit(functools.partial(cyclic_shift, displacement=disp))
    out = jax.block_until_ready(fwd(x))
    ref = jnp.roll(x, shift=(disp,) * 3, axis=(1, 2, 3))
    assert out.shape == x.shape
    assert jnp.array_equal(out, ref)

    # 2) H-tiled path with multi-row blocks (TH = gcd(6, 8) = 2).
    fwd_t = jax.jit(functools.partial(cyclic_shift, displacement=-2,
                                      max_full_block_bytes=1))
    out2 = jax.block_until_ready(fwd_t(x))
    assert jnp.array_equal(out2, ref)

    # 3) H-tiled path with single-row blocks (gcd(3, 8) = 1), positive shift.
    fwd_t1 = jax.jit(functools.partial(cyclic_shift, displacement=3,
                                       max_full_block_bytes=1))
    out3 = jax.block_until_ready(fwd_t1(x))
    ref3 = jnp.roll(x, shift=(3, 3, 3), axis=(1, 2, 3))
    assert jnp.array_equal(out3, ref3)

    # 4) Full-block path with input/output aliasing enabled.
    fwd_alias = jax.jit(functools.partial(cyclic_shift, displacement=disp,
                                          donate_input=True))
    out4 = jax.block_until_ready(fwd_alias(x))
    assert jnp.array_equal(out4, ref)

    print("KERNEL_OK")
</pallas_src>

<mosaic_0001>
module attributes {stable_mosaic.version = 11 : i64} {
  func.func @_full_block_kernel(%arg0: i32, %arg1: memref<1x8x8x256xf32, #tpu.memory_space<vmem>>, %arg2: memref<1x8x8x256xf32, #tpu.memory_space<vmem>>) attributes {dimension_semantics = [#tpu.dimension_semantics<parallel>], iteration_bounds = array<i64: 2>, scalar_prefetch = 0 : i64, scratch_operands = 0 : i64, tpu.core_type = #tpu.core_type<tc>, window_params = [{transform_indices = @transform_0, window_bounds = array<i64: 1, 8, 8, 256>}, {transform_indices = @transform_1, window_bounds = array<i64: 1, 8, 8, 256>}]} {
    %c0 = arith.constant 0 : index
    %c0_0 = arith.constant 0 : index
    %c0_1 = arith.constant 0 : index
    %c0_2 = arith.constant 0 : index
    %0 = vector.load %arg1[%c0, %c0_0, %c0_1, %c0_2] : memref<1x8x8x256xf32, #tpu.memory_space<vmem>>, vector<1x8x8x256xf32>
    %1 = vector.shape_cast %0 : vector<1x8x8x256xf32> to vector<8x8x256xf32>
    %c6_i32 = arith.constant 6 : i32
    %2 = tpu.dynamic_rotate %1 by %c6_i32 dim 1 : vector<8x8x256xf32>, i32 -> vector<8x8x256xf32>
    %c192_i32 = arith.constant 192 : i32
    %3 = tpu.dynamic_rotate %2 by %c192_i32 dim 2 : vector<8x8x256xf32>, i32 -> vector<8x8x256xf32>
    %4 = vector.extract_strided_slice %3 {offsets = [0, 0, 0], sizes = [2, 8, 256], strides = [1, 1, 1]} : vector<8x8x256xf32> to vector<2x8x256xf32>
    %c0_3 = arith.constant 0 : index
    %c6 = arith.constant 6 : index
    %c0_4 = arith.constant 0 : index
    %c0_5 = arith.constant 0 : index
    %5 = vector.load %arg2[%c0_3, %c6, %c0_4, %c0_5] : memref<1x8x8x256xf32, #tpu.memory_space<vmem>>, vector<1x2x8x256xf32>
    %6 = vector.shape_cast %5 : vector<1x2x8x256xf32> to vector<2x8x256xf32>
    %7 = vector.shape_cast %4 : vector<2x8x256xf32> to vector<1x2x8x256xf32>
    tpu.vector_store %arg2[%c0_3, %c6, %c0_4, %c0_5], %7 {strides = array<i32>} : memref<1x8x8x256xf32, #tpu.memory_space<vmem>>, vector<1x2x8x256xf32>,
    %8 = vector.extract_strided_slice %3 {offsets = [2, 0, 0], sizes = [6, 8, 256], strides = [1, 1, 1]} : vector<8x8x256xf32> to vector<6x8x256xf32>
    %c0_6 = arith.constant 0 : index
    %c0_7 = arith.constant 0 : index
    %c0_8 = arith.constant 0 : index
    %c0_9 = arith.constant 0 : index
    %9 = vector.load %arg2[%c0_6, %c0_7, %c0_8, %c0_9] : memref<1x8x8x256xf32, #tpu.memory_space<vmem>>, vector<1x6x8x256xf32>
    %10 = vector.shape_cast %9 : vector<1x6x8x256xf32> to vector<6x8x256xf32>
    %11 = vector.shape_cast %8 : vector<6x8x256xf32> to vector<1x6x8x256xf32>
    tpu.vector_store %arg2[%c0_6, %c0_7, %c0_8, %c0_9], %11 {strides = array<i32>} : memref<1x8x8x256xf32, #tpu.memory_space<vmem>>, vector<1x6x8x256xf32>,
    return
  }
  func.func @transform_0(%arg0: i32) -> (i32, i32, i32, i32) {
    %c0_i32 = arith.constant 0 : i32
    %c0_i32_0 = arith.constant 0 : i32
    %c0_i32_1 = arith.constant 0 : i32
    %c0_i32_2 = arith.constant 0 : i32
    return %arg0, %c0_i32, %c0_i32_0, %c0_i32_1 : i32, i32, i32, i32
  }
  func.func @transform_1(%arg0: i32) -> (i32, i32, i32, i32) {
    %c0_i32 = arith.constant 0 : i32
    %c0_i32_0 = arith.constant 0 : i32
    %c0_i32_1 = arith.constant 0 : i32
    %c0_i32_2 = arith.constant 0 : i32
    return %arg0, %c0_i32, %c0_i32_0, %c0_i32_1 : i32, i32, i32, i32
  }
}

</mosaic_0001>

<llo_original>
// kernel: cyclic_shift.1
$region0: #{cyclic_shift.1}
  #allocation0 [shape = 'u32[]', space=smem, size = 0x4, offset = 0x4, fixed_abs, tag = 'smem constant byte address 0x4 - core index']
  #allocation1 [shape = 'u32[144,128]{1,0:T(1,128)}', space=vmem, size = 0x12000, scoped, tag = 'internal scratch']
  %s0 = inlined_call_operand.vmem [shape: f32[2,8,8,256], index: 0, kind: input, shape index: {}]
  %s1 = inlined_call_operand.vmem [shape: f32[2,8,8,256], index: 1, kind: output, shape index: {}]
  %s2 = sld [smem:[#allocation0]]
  $region37: #{cyclic_shift.1} parent=0
    _
  %s4 = ssub.s32 1, %s2
  %s5 = scalar_select 0, %s4, %s2
  loop: start=0, step=1, limit=4
  $region2: #{cyclic_shift.1} parent=0 // loop_pre_header
    _
  $region3: #{cyclic_shift.1} parent=0 // loop_header
    %s7 = sphi 0, %s11
    %p8 = scmp.ge.s32.totalorder %s7, 4
    %s17 = sphi 0, %s19
    %s20 = sphi 0, %s17
    %s21 = sphi 0, %s20
    %s37 = sphi 0, %s21
    %s43 = sphi 0, %s45
    %s46 = sphi 0, %s43
    %s47 = sphi 0, %s46
    %s63 = sphi 0, %s47
  $region4: #{cyclic_shift.1} parent=0 // loop_header_branch
    %10 = sbr.rel (%p8) target = $region8
  $region5: #{cyclic_shift.1} parent=0 // loop_body
    %s12 = ssub.s32 %s7, 1
    %s13 = ssub.s32 %s7, 2
    %s14 = sadd.s32 %s7, 1
    %s15 = ssub.s32 %s7, %s14
    %p16 = scmp.eq.s32.totalorder %s15, 0
    %s18 = sadd.s32 %s17, 1
    %s19 = scalar_select %p16, %s17, %s18
    %p22 = pneg %p16
    %p23 = scmp.eq.s32.totalorder %s7, 1
    %p24 = por %p22, %p23
    %p25 = scmp.ne.s32.totalorder %s17, %s20
    %p26 = scmp.eq.s32.totalorder %s7, 0
    %p27 = por %p25, %p26
    %p28 = scmp.ne.s32.totalorder %s17, %s20
    %p29 = scmp.eq.s32.totalorder %s12, 1
    %p30 = por %p28, %p29
    %p31 = scmp.ne.s32.totalorder %s20, %s21
    %p32 = scmp.eq.s32.totalorder %s12, 0
    %p33 = por %p31, %p32
    %p34 = scmp.ne.s32.totalorder %s20, %s21
    %p35 = scmp.eq.s32.totalorder %s13, 1
    %p36 = por %p34, %p35
    %p38 = scmp.ne.s32.totalorder %s21, %s37
    %p39 = scmp.eq.s32.totalorder %s13, 0
    %p40 = por %p38, %p39
    %s41 = ssub.s32 %s7, %s14
    %p42 = scmp.eq.s32.totalorder %s41, 0
    %s44 = sadd.s32 %s43, 1
    %s45 = scalar_select %p42, %s43, %s44
    %p48 = pneg %p42
    %p49 = scmp.eq.s32.totalorder %s7, 1
    %p50 = por %p48, %p49
    %p51 = scmp.ne.s32.totalorder %s43, %s46
    %p52 = scmp.eq.s32.totalorder %s7, 0
    %p53 = por %p51, %p52
    %p54 = scmp.ne.s32.totalorder %s43, %s46
    %p55 = scmp.eq.s32.totalorder %s12, 1
    %p56 = por %p54, %p55
    %p57 = scmp.ne.s32.totalorder %s46, %s47
    %p58 = scmp.eq.s32.totalorder %s12, 0
    %p59 = por %p57, %p58
    %p60 = scmp.ne.s32.totalorder %s46, %s47
    %p61 = scmp.eq.s32.totalorder %s13, 1
    %p62 = por %p60, %p61
    %p64 = scmp.ne.s32.totalorder %s47, %s63
    %p65 = scmp.eq.s32.totalorder %s13, 0
    %p66 = por %p64, %p65
    %p67 = scmp.le.s32.totalorder 1, %s7
    %p68 = scmp.lt.s32.totalorder %s7, 3
    %p69 = pnand %p67, %p68
    %p70 = pneg %p69
    // Predicated region
    $region9: #{cyclic_shift.1} parent=5 // pred_check
      _
    $region10: #{cyclic_shift.1} parent=5 // pred_check_branch
      %72 = sbr.rel (%p69) target = $region12
    $region11: #{cyclic_shift.1} parent=5 // pred_region
      %s73 = ssub.s32 %s7, 1
    $region12: #{cyclic_shift.1} parent=5 // pred_fallthru
      _
    %p74 = scmp.lt.s32.totalorder %s7, 2
    // Predicated region
    $region13: #{cyclic_shift.1} parent=5 // pred_check
      %p75 = pneg %p74
    $region14: #{cyclic_shift.1} parent=5 // pred_check_branch
      %77 = sbr.rel (%p75) target = $region16
    $region15: #{cyclic_shift.1} parent=5 // pred_region
      // Predicated region
      $region17: #{cyclic_shift.1} parent=15 // pred_check
        %p78 = pneg %p27
      $region18: #{cyclic_shift.1} parent=15 // pred_check_branch
        %80 = sbr.rel (%p78) target = $region20
      $region19: #{cyclic_shift.1} parent=15 // pred_region
        %p81 = scmp.lt.s32.totalorder %s7, 1
        %s82 = scalar_select %p81, %s7, 1
        %s83 = smul.addr %s82, 16
        %s84 = smul.addr %s83, 8
        %s85 = scalar_lea.vmem %s0, %s84
      $region20: #{cyclic_shift.1} parent=15 // pred_fallthru
        _
    $region16: #{cyclic_shift.1} parent=5 // pred_fallthru
      _
    %p86 = scmp.le.s32.totalorder 1, %s7
    %p87 = scmp.lt.s32.totalorder %s7, 3
    %p88 = pnand %p86, %p87
    %p89 = pneg %p88
    // Predicated region
    $region21: #{cyclic_shift.1} parent=5 // pred_check
      _
    $region22: #{cyclic_shift.1} parent=5 // pred_check_branch
      %91 = sbr.rel (%p88) target = $region24
    $region23: #{cyclic_shift.1} parent=5 // pred_region
      %s92 = ssub.s32 %s7, 1
      %p93 = scmp.lt.s32.totalorder %s12, 1
      %s94 = scalar_select %p93, %s12, 1
      %s95 = smul.addr %s94, 16
      %s96 = smul.addr %s95, 8
      %s97 = scalar_lea.vmem %s0, %s96
      %p98 = pneg %p33
      %p99 = pneg %p30
      %p100 = pneg %p59
      %p101 = pneg %p56
      %p102 = scmp.lt.s32.totalorder %s12, 1
      %s103 = scalar_select %p102, %s12, 1
      %s104 = smul.addr %s103, 16
      %s105 = smul.addr %s104, 8
      %s106 = scalar_lea.vmem %s1, %s105
      %p107 = scmp.lt.s32.totalorder %s12, 1
      %s108 = scalar_select %p107, %s12, 1
      %s109 = smul.addr %s108, 16
      %s110 = smul.addr %s109, 8
      %s111 = scalar_lea.vmem %s0, %s110
      %p112 = scmp.lt.s32.totalorder %s12, 1
      %s113 = scalar_select %p112, %s12, 1
      %s114 = smul.addr %s113, 16
      %s115 = smul.addr %s114, 8
      %s116 = scalar_lea.vmem %s1, %s115
      %v117 = vld [vmem:[%s111] sm:$0xff]
      %v118 = vld [vmem:[%s111 + $0x8] sm:$0xff]
      %v119 = vld [vmem:[%s111 + $0x10] sm:$0xff]
      %v120 = vld [vmem:[%s111 + $0x18] sm:$0xff]
      %v121 = vld [vmem:[%s111 + $0x20] sm:$0xff]
      %v122 = vld [vmem:[%s111 + $0x28] sm:$0xff]
      %v123 = vld [vmem:[%s111 + $0x30] sm:$0xff]
      %v124 = vld [vmem:[%s111 + $0x38] sm:$0xff]
      %v125 = vld [vmem:[%s111 + $0x40] sm:$0xff]
      %v126 = vld [vmem:[%s111 + $0x48] sm:$0xff]
      %v127 = vld [vmem:[%s111 + $0x50] sm:$0xff]
      %v128 = vld [vmem:[%s111 + $0x58] sm:$0xff]
      %v129 = vld [vmem:[%s111 + $0x60] sm:$0xff]
      %v130 = vld [vmem:[%s111 + $0x68] sm:$0xff]
      %v131 = vld [vmem:[%s111 + $0x70] sm:$0xff]
      %v132 = vld [vmem:[%s111 + $0x78] sm:$0xff]
      %v133 = vrot.slane %v117, 2
      %v134 = vrot.slane %v118, 2
      %v135 = vrot.slane %v119, 2
      %v136 = vrot.slane %v120, 2
      %v137 = vrot.slane %v121, 2
      %v138 = vrot.slane %v122, 2
      %v139 = vrot.slane %v123, 2
      %v140 = vrot.slane %v124, 2
      %v141 = vrot.slane %v125, 2
      %v142 = vrot.slane %v126, 2
      %v143 = vrot.slane %v127, 2
      %v144 = vrot.slane %v128, 2
      %v145 = vrot.slane %v129, 2
      %v146 = vrot.slane %v130, 2
      %v147 = vrot.slane %v131, 2
      %v148 = vrot.slane %v132, 2
      %149 = vrot.lane.b32.xlu0 %v133, 64
      %v150 = vpop.permute.xlu0 %149
      %151 = vrot.lane.b32.xlu0 %v135, 64
      %v152 = vpop.permute.xlu0 %151
      %153 = vrot.lane.b32.xlu0 %v137, 64
      %v154 = vpop.permute.xlu0 %153
      %155 = vrot.lane.b32.xlu0 %v139, 64
      %v156 = vpop.permute.xlu0 %155
      %157 = vrot.lane.b32.xlu0 %v141, 64
      %v158 = vpop.permute.xlu0 %157
      %159 = vrot.lane.b32.xlu0 %v143, 64
      %v160 = vpop.permute.xlu0 %159
      %161 = vrot.lane.b32.xlu0 %v145, 64
      %v162 = vpop.permute.xlu0 %161
      %163 = vrot.lane.b32.xlu0 %v147, 64
      %v164 = vpop.permute.xlu0 %163
      %165 = vrot.lane.b32.xlu0 %v134, 64
      %v166 = vpop.permute.xlu0 %165
      %167 = vrot.lane.b32.xlu0 %v136, 64
      %v168 = vpop.permute.xlu0 %167
      %169 = vrot.lane.b32.xlu0 %v138, 64
      %v170 = vpop.permute.xlu0 %169
      %171 = vrot.lane.b32.xlu0 %v140, 64
      %v172 = vpop.permute.xlu0 %171
      %173 = vrot.lane.b32.xlu0 %v142, 64
      %v174 = vpop.permute.xlu0 %173
      %175 = vrot.lane.b32.xlu0 %v144, 64
      %v176 = vpop.permute.xlu0 %175
      %177 = vrot.lane.b32.xlu0 %v146, 64
      %v178 = vpop.permute.xlu0 %177
      %179 = vrot.lane.b32.xlu0 %v148, 64
      %v180 = vpop.permute.xlu0 %179
      %v181 = vlaneseq
      %v182 = vand.u32 %v181, 127
      %vm183 = vcmp.lt.s32.totalorder %v182, 64
      %v184 = vsel %vm183, %v150, %v166
      %v185 = vsel %vm183, %v152, %v168
      %v186 = vsel %vm183, %v154, %v170
      %v187 = vsel %vm183, %v156, %v172
      %v188 = vsel %vm183, %v158, %v174
      %v189 = vsel %vm183, %v160, %v176
      %v190 = vsel %vm183, %v162, %v178
      %v191 = vsel %vm183, %v164, %v180
      %v192 = vsel %vm183, %v166, %v150
      %v193 = vsel %vm183, %v168, %v152
      %v194 = vsel %vm183, %v170, %v154
      %v195 = vsel %vm183, %v172, %v156
      %v196 = vsel %vm183, %v174, %v158
      %v197 = vsel %vm183, %v176, %v160
      %v198 = vsel %vm183, %v178, %v162
      %v199 = vsel %vm183, %v180, %v164
      %s200 = scalar_lea.vmem %s116, 96
      %201 = vst [vmem:[%s200] sm:$0xff] %v184
      %202 = vst [vmem:[%s200 + $0x8] sm:$0xff] %v192
      %203 = vst [vmem:[%s200 + $0x10] sm:$0xff] %v185
      %204 = vst [vmem:[%s200 + $0x18] sm:$0xff] %v193
      %205 = vst [vmem:[%s116] sm:$0xff] %v186
      %206 = vst [vmem:[%s116 + $0x8] sm:$0xff] %v194
      %207 = vst [vmem:[%s116 + $0x10] sm:$0xff] %v187
      %208 = vst [vmem:[%s116 + $0x18] sm:$0xff] %v195
      %209 = vst [vmem:[%s116 + $0x20] sm:$0xff] %v188
      %210 = vst [vmem:[%s116 + $0x28] sm:$0xff] %v196
      %211 = vst [vmem:[%s116 + $0x30] sm:$0xff] %v189
      %212 = vst [vmem:[%s116 + $0x38] sm:$0xff] %v197
      %213 = vst [vmem:[%s116 + $0x40] sm:$0xff] %v190
      %214 = vst [vmem:[%s116 + $0x48] sm:$0xff] %v198
      %215 = vst [vmem:[%s116 + $0x50] sm:$0xff] %v191
      %216 = vst [vmem:[%s116 + $0x58] sm:$0xff] %v199
      %p217 = scmp.lt.s32.totalorder %s12, 1
      %s218 = scalar_select %p217, %s12, 1
      %s219 = smul.addr %s218, 16
      %s220 = smul.addr %s219, 8
      %s221 = scalar_lea.vmem %s1, %s220
      // Predicated region
      $region25: #{cyclic_shift.1} parent=23 // pred_check
        %p222 = pneg %p56
      $region26: #{cyclic_shift.1} parent=23 // pred_check_branch
        %224 = sbr.rel (%p222) target = $region28
      $region27: #{cyclic_shift.1} parent=23 // pred_region
        _
      $region28: #{cyclic_shift.1} parent=23 // pred_fallthru
        _
    $region24: #{cyclic_shift.1} parent=5 // pred_fallthru
      _
    %p225 = scmp.le.s32.totalorder 2, %s7
    // Predicated region
    $region29: #{cyclic_shift.1} parent=5 // pred_check
      %p226 = pneg %p225
    $region30: #{cyclic_shift.1} parent=5 // pred_check_branch
      %228 = sbr.rel (%p226) target = $region32
    $region31: #{cyclic_shift.1} parent=5 // pred_region
      %s229 = ssub.s32 %s7, 2
      // Predicated region
      $region33: #{cyclic_shift.1} parent=31 // pred_check
        %p230 = pneg %p62
      $region34: #{cyclic_shift.1} parent=31 // pred_check_branch
        %232 = sbr.rel (%p230) target = $region36
      $region35: #{cyclic_shift.1} parent=31 // pred_region
        %p233 = scmp.lt.s32.totalorder %s13, 1
        %s234 = scalar_select %p233, %s13, 1
        %s235 = smul.addr %s234, 16
        %s236 = smul.addr %s235, 8
        %s237 = scalar_lea.vmem %s1, %s236
      $region36: #{cyclic_shift.1} parent=31 // pred_fallthru
        _
    $region32: #{cyclic_shift.1} parent=5 // pred_fallthru
      _
  $region6: #{cyclic_shift.1} parent=0 // loop_footer
    %s11 = sadd.s32 1, %s7
  $region7: #{cyclic_shift.1} parent=0 // loop_footer_branch
    %6 = sbr.rel target = $region3
  $region8: #{cyclic_shift.1} parent=0 // loop_exit
    _

</llo_original>
